<compile_context>
chip_gen: v7x
topology: tpu7x:2x2x1
jax: 0.10.0
libtpu: 0.0.40
codegen_flags: <defaults>
</compile_context>

<pallas_src>
import math
import jax
import jax.numpy as jnp
from jax.experimental import pallas as pl
from jax.experimental.pallas import tpu as pltpu

_GELU_C = 0.7978845608028654  # sqrt(2/pi)


# --------------------------------------------------------------------------
# Kernel
# --------------------------------------------------------------------------
def _mlp_kernel(x_ref, w1_ref, b1_ref, w2_ref, b2_ref, o_ref):
    # x_ref:  (tm, C)   f32 activation tile (cast to bf16 in-kernel)
    # w1_ref: (C, th)   bf16 c_fc weight column-slab
    # b1_ref: (1, th)   f32 c_fc bias slab
    # w2_ref: (th, C)   bf16 c_proj weight row-slab
    # b2_ref: (1, C)    f32 c_proj bias (full)
    # o_ref:  (tm, C)   f32 output tile, resident across the reduction axis j,
    #                   used directly as the accumulator.
    j = pl.program_id(1)

    @pl.when(j == 0)
    def _():
        o_ref[...] = jnp.zeros_like(o_ref)

    # c_fc slice: (tm, C) @ (C, th) on the MXU, f32 accumulation, f32 bias add.
    x_mxu = x_ref[...].astype(w1_ref.dtype)
    h = jnp.dot(x_mxu, w1_ref[...], preferred_element_type=jnp.float32)
    h = h + b1_ref[...]

    # GELU(approximate='tanh') in f32:
    #   0.5 * h * (1 + tanh(sqrt(2/pi) * (h + 0.044715 * h^3)))
    # tanh routes to the EUP slot and hides under the MXU work.
    g = 0.5 * h * (1.0 + jnp.tanh(_GELU_C * (h + 0.044715 * h * h * h)))

    # c_proj partial: (tm, th) @ (th, C); accumulate directly into the
    # resident f32 output tile.
    o_ref[...] += jnp.dot(g.astype(w2_ref.dtype), w2_ref[...],
                          preferred_element_type=jnp.float32)

    @pl.when(j == pl.num_programs(1) - 1)
    def _():
        o_ref[...] += b2_ref[...]


# --------------------------------------------------------------------------
# Tiling / device heuristics
# --------------------------------------------------------------------------
def _pick_tile(n, cap, aligns):
    """Largest divisor of n that is <= cap and a multiple of one of `aligns`
    (tried in order of preference); falls back to the full extent n."""
    cap = max(1, min(cap, n))
    for align in aligns:
        for d in range(cap, 0, -1):
            if n % d == 0 and d % align == 0:
                return d
    return n


def _device_defaults():
    """Generation-dependent tile / VMEM defaults, keyed off VMEM capacity."""
    vmem_bytes = 128 << 20
    try:
        vmem_bytes = int(pltpu.get_tpu_info().vmem_capacity_bytes)
    except Exception:
        pass
    if vmem_bytes <= (64 << 20):
        # v7x-class: 64 MiB VMEM per TC, ~620 flops/byte balance per TC.
        return {"tm": 512, "th": 512, "vmem_limit": 56 << 20}
    # v5e / v6e: 128 MiB VMEM. tm=1024 clears the v6e ~650 flops/byte knee;
    # on v5e it simply means fewer, fully MXU-bound reduction steps.
    return {"tm": 1024, "th": 512, "vmem_limit": 100 << 20}


# --------------------------------------------------------------------------
# Host wrapper
# --------------------------------------------------------------------------
def prepare_mlp_weights(w1, b1, w2, b2, *, mxu_dtype=jnp.bfloat16):
    """One-time weight preparation (cast MXU operands to bf16, biases to f32).
    Call once; do NOT re-cast on every forward."""
    H = w1.shape[1]
    C = w2.shape[1]
    return (w1.astype(mxu_dtype),
            b1.reshape(1, H).astype(jnp.float32),
            w2.astype(mxu_dtype),
            b2.reshape(1, C).astype(jnp.float32))


def mlp_forward(x, w1, b1_2d, w2, b2_2d, *, tm=None, th=None,
                vmem_limit=None, mxu_dtype=jnp.bfloat16):
    """x: (B, T, C) float32.  w1: (C, 4C) bf16, b1_2d: (1, 4C) f32,
    w2: (4C, C) bf16, b2_2d: (1, C) f32 (use prepare_mlp_weights)."""
    B, T, C = x.shape
    H = w1.shape[1]
    M = B * T

    defaults = _device_defaults()
    tm = defaults["tm"] if tm is None else tm
    th = defaults["th"] if th is None else th
    vmem_limit = defaults["vmem_limit"] if vmem_limit is None else vmem_limit

    # Row tile aligned to the MXU granule (256 > 128 > 16 sublanes), hidden
    # tile a multiple of 128 lanes; both fall back to full extent.
    tm = _pick_tile(M, tm, (256, 128, 16, 8))
    th = _pick_tile(H, th, (128,))

    # Keep x in f32 (single HBM read); cast to bf16 inside the kernel.
    x2d = x.reshape(M, C)
    # Weights expected pre-cast; guard anyway (cast only if needed).
    w1c = w1 if w1.dtype == mxu_dtype else w1.astype(mxu_dtype)
    w2c = w2 if w2.dtype == mxu_dtype else w2.astype(mxu_dtype)

    grid = (M // tm, H // th)

    # Real HBM traffic: weights re-streamed once per row tile.
    w_bytes = (w1c.size * w1c.dtype.itemsize + w2c.size * w2c.dtype.itemsize)
    cost = pl.CostEstimate(
        flops=2 * 2 * M * C * H,                 # two matmuls
        transcendentals=M * H,                   # tanh per hidden element
        bytes_accessed=int((M // tm) * w_bytes   # weight re-streaming
                           + x2d.size * x2d.dtype.itemsize
                           + M * C * x.dtype.itemsize
                           + b1_2d.size * 4 + b2_2d.size * 4),
    )

    out2d = pl.pallas_call(
        _mlp_kernel,
        out_shape=jax.ShapeDtypeStruct((M, C), x.dtype),
        grid_spec=pltpu.PrefetchScalarGridSpec(
            num_scalar_prefetch=0,
            grid=grid,
            in_specs=[
                pl.BlockSpec((tm, C), lambda i, j: (i, 0)),   # x tile (f32)
                pl.BlockSpec((C, th), lambda i, j: (0, j)),   # W1 column slab
                pl.BlockSpec((1, th), lambda i, j: (0, j)),   # b1 slab
                pl.BlockSpec((th, C), lambda i, j: (j, 0)),   # W2 row slab
                pl.BlockSpec((1, C), lambda i, j: (0, 0)),    # b2 (full)
            ],
            out_specs=pl.BlockSpec((tm, C), lambda i, j: (i, 0)),
        ),
        compiler_params=pltpu.CompilerParams(
            dimension_semantics=("parallel", "arbitrary"),
            vmem_limit_bytes=vmem_limit,
        ),
        cost_estimate=cost,
    )(x2d, w1c, b1_2d, w2c, b2_2d)

    return out2d.reshape(B, T, C)


# --------------------------------------------------------------------------
# Init / reference
# --------------------------------------------------------------------------
def init_mlp_params(key, n_embed):
    """nn.Linear-style U[-1/sqrt(fan_in), +] init; weights stored transposed
    as (in_features, out_features)."""
    hidden = 4 * n_embed
    k1, k2, k3, k4 = jax.random.split(key, 4)

    bound_fc = 1.0 / math.sqrt(n_embed)
    w1 = jax.random.uniform(k1, (n_embed, hidden), jnp.float32,
                            -bound_fc, bound_fc)
    b1 = jax.random.uniform(k2, (hidden,), jnp.float32, -bound_fc, bound_fc)

    bound_proj = 1.0 / math.sqrt(hidden)
    w2 = jax.random.uniform(k3, (hidden, n_embed), jnp.float32,
                            -bound_proj, bound_proj)
    b2 = jax.random.uniform(k4, (n_embed,), jnp.float32, -bound_proj, bound_proj)
    return w1, b1, w2, b2


def mlp_reference(x, w1, b1, w2, b2):
    """Pure-JAX f32 reference (matches torch semantics, tanh-GELU)."""
    h = x @ w1 + b1
    g = 0.5 * h * (1.0 + jnp.tanh(_GELU_C * (h + 0.044715 * h ** 3)))
    return g @ w2 + b2


if __name__ == "__main__":
    # Small config: batch=2, seq=8, n_embed=32 -> hidden=128.
    B, T, n_embed = 2, 8, 32

    key = jax.random.PRNGKey(0)
    kx, kp = jax.random.split(key)
    x = jax.random.normal(kx, (B, T, n_embed), jnp.float32)
    w1, b1, w2, b2 = init_mlp_params(kp, n_embed)

    # Cast MXU weights once (not per call).
    w1c, b1_2d, w2c, b2_2d = prepare_mlp_weights(w1, b1, w2, b2)

    out = jax.block_until_ready(mlp_forward(x, w1c, b1_2d, w2c, b2_2d))

    ref = mlp_reference(x, w1, b1, w2, b2)
    assert out.shape == (B, T, n_embed)
    # bf16 MXU operands (f32 accumulation) -> loosened tolerance vs f32 ref.
    assert jnp.allclose(out, ref, atol=3e-2, rtol=3e-2), "mismatch vs reference"

    print("KERNEL_OK")
</pallas_src>

<mosaic_0001>
module attributes {stable_mosaic.version = 11 : i64} {
  func.func @_mlp_kernel(%arg0: i32, %arg1: i32, %arg2: memref<16x32xf32, #tpu.memory_space<vmem>>, %arg3: memref<32x128xbf16, #tpu.memory_space<vmem>>, %arg4: memref<1x128xf32, #tpu.memory_space<vmem>>, %arg5: memref<128x32xbf16, #tpu.memory_space<vmem>>, %arg6: memref<1x32xf32, #tpu.memory_space<vmem>>, %arg7: memref<16x32xf32, #tpu.memory_space<vmem>>) attributes {dimension_semantics = [#tpu.dimension_semantics<parallel>, #tpu.dimension_semantics<arbitrary>], iteration_bounds = array<i64: 1, 1>, scalar_prefetch = 0 : i64, scratch_operands = 0 : i64, tpu.core_type = #tpu.core_type<tc>, window_params = [{transform_indices = @transform_0, window_bounds = array<i64: 16, 32>}, {transform_indices = @transform_1, window_bounds = array<i64: 32, 128>}, {transform_indices = @transform_2, window_bounds = array<i64: 1, 128>}, {transform_indices = @transform_3, window_bounds = array<i64: 128, 32>}, {pipeline_mode = #tpu.pipeline_mode<synchronous>, transform_indices = @transform_4, window_bounds = array<i64: 1, 32>}, {transform_indices = @transform_5, window_bounds = array<i64: 16, 32>}]} {
    %c0_i32 = arith.constant 0 : i32
    %0 = arith.cmpi eq, %arg1, %c0_i32 : i32
    %1 = arith.extui %0 : i1 to i32
    %c0_i32_0 = arith.constant 0 : i32
    %2 = arith.cmpi ne, %1, %c0_i32_0 : i32
    scf.if %2 {
      %cst_19 = arith.constant 0.000000e+00 : f32
      %32 = vector.broadcast %cst_19 : f32 to vector<16x32xf32>
      %c0_20 = arith.constant 0 : index
      %c0_21 = arith.constant 0 : index
      %33 = vector.load %arg7[%c0_20, %c0_21] : memref<16x32xf32, #tpu.memory_space<vmem>>, vector<16x32xf32>
      tpu.vector_store %arg7[%c0_20, %c0_21], %32 {strides = array<i32>} : memref<16x32xf32, #tpu.memory_space<vmem>>, vector<16x32xf32>,
    } else {
    }
    %c0 = arith.constant 0 : index
    %c0_1 = arith.constant 0 : index
    %3 = vector.load %arg2[%c0, %c0_1] : memref<16x32xf32, #tpu.memory_space<vmem>>, vector<16x32xf32>
    %4 = arith.truncf %3 : vector<16x32xf32> to vector<16x32xbf16>
    %c0_2 = arith.constant 0 : index
    %c0_3 = arith.constant 0 : index
    %5 = vector.load %arg3[%c0_2, %c0_3] : memref<32x128xbf16, #tpu.memory_space<vmem>>, vector<32x128xbf16>
    %cst = arith.constant dense<0.000000e+00> : vector<16x128xf32>
    %6 = tpu.matmul %4, %5, %cst {dimension_numbers = #tpu.dot_dimension_numbers<[1], [0], [0], [1], [0, 0, 1, 1], [], []>} : vector<16x32xbf16>, vector<32x128xbf16>, vector<16x128xf32> -> vector<16x128xf32>
    %c0_4 = arith.constant 0 : index
    %c0_5 = arith.constant 0 : index
    %7 = vector.load %arg4[%c0_4, %c0_5] : memref<1x128xf32, #tpu.memory_space<vmem>>, vector<1x128xf32>
    %8 = vector.broadcast %7 : vector<1x128xf32> to vector<16x128xf32>
    %9 = arith.addf %6, %8 : vector<16x128xf32>
    %cst_6 = arith.constant 5.000000e-01 : f32
    %10 = vector.broadcast %cst_6 : f32 to vector<16x128xf32>
    %11 = arith.mulf %10, %9 : vector<16x128xf32>
    %cst_7 = arith.constant 4.471500e-02 : f32
    %12 = vector.broadcast %cst_7 : f32 to vector<16x128xf32>
    %13 = arith.mulf %12, %9 : vector<16x128xf32>
    %14 = arith.mulf %13, %9 : vector<16x128xf32>
    %15 = arith.mulf %14, %9 : vector<16x128xf32>
    %16 = arith.addf %9, %15 : vector<16x128xf32>
    %cst_8 = arith.constant 0.797884583 : f32
    %17 = vector.broadcast %cst_8 : f32 to vector<16x128xf32>
    %18 = arith.mulf %17, %16 : vector<16x128xf32>
    %19 = math.tanh %18 : vector<16x128xf32>
    %cst_9 = arith.constant 1.000000e+00 : f32
    %20 = vector.broadcast %cst_9 : f32 to vector<16x128xf32>
    %21 = arith.addf %20, %19 : vector<16x128xf32>
    %22 = arith.mulf %11, %21 : vector<16x128xf32>
    %c0_10 = arith.constant 0 : index
    %c0_11 = arith.constant 0 : index
    %23 = vector.load %arg7[%c0_10, %c0_11] : memref<16x32xf32, #tpu.memory_space<vmem>>, vector<16x32xf32>
    %24 = arith.truncf %22 : vector<16x128xf32> to vector<16x128xbf16>
    %c0_12 = arith.constant 0 : index
    %c0_13 = arith.constant 0 : index
    %25 = vector.load %arg5[%c0_12, %c0_13] : memref<128x32xbf16, #tpu.memory_space<vmem>>, vector<128x32xbf16>
    %cst_14 = arith.constant dense<0.000000e+00> : vector<16x32xf32>
    %26 = tpu.matmul %24, %25, %cst_14 {dimension_numbers = #tpu.dot_dimension_numbers<[1], [0], [0], [1], [0, 0, 1, 1], [], []>} : vector<16x128xbf16>, vector<128x32xbf16>, vector<16x32xf32> -> vector<16x32xf32>
    %27 = arith.addf %23, %26 : vector<16x32xf32>
    %c0_15 = arith.constant 0 : index
    %c0_16 = arith.constant 0 : index
    %28 = vector.load %arg7[%c0_15, %c0_16] : memref<16x32xf32, #tpu.memory_space<vmem>>, vector<16x32xf32>
    tpu.vector_store %arg7[%c0_15, %c0_16], %27 {strides = array<i32>} : memref<16x32xf32, #tpu.memory_space<vmem>>, vector<16x32xf32>,
    %c0_i32_17 = arith.constant 0 : i32
    %29 = arith.cmpi eq, %arg1, %c0_i32_17 : i32
    %30 = arith.extui %29 : i1 to i32
    %c0_i32_18 = arith.constant 0 : i32
    %31 = arith.cmpi ne, %30, %c0_i32_18 : i32
    scf.if %31 {
      %c0_19 = arith.constant 0 : index
      %c0_20 = arith.constant 0 : index
      %32 = vector.load %arg7[%c0_19, %c0_20] : memref<16x32xf32, #tpu.memory_space<vmem>>, vector<16x32xf32>
      %c0_21 = arith.constant 0 : index
      %c0_22 = arith.constant 0 : index
      %33 = vector.load %arg6[%c0_21, %c0_22] : memref<1x32xf32, #tpu.memory_space<vmem>>, vector<1x32xf32>
      %34 = vector.broadcast %33 : vector<1x32xf32> to vector<16x32xf32>
      %35 = arith.addf %32, %34 : vector<16x32xf32>
      %c0_23 = arith.constant 0 : index
      %c0_24 = arith.constant 0 : index
      %36 = vector.load %arg7[%c0_23, %c0_24] : memref<16x32xf32, #tpu.memory_space<vmem>>, vector<16x32xf32>
      tpu.vector_store %arg7[%c0_23, %c0_24], %35 {strides = array<i32>} : memref<16x32xf32, #tpu.memory_space<vmem>>, vector<16x32xf32>,
    } else {
    }
    return
  }
  func.func @transform_0(%arg0: i32, %arg1: i32) -> (i32, i32) {
    %c0_i32 = arith.constant 0 : i32
    %c0_i32_0 = arith.constant 0 : i32
    return %arg0, %c0_i32 : i32, i32
  }
  func.func @transform_1(%arg0: i32, %arg1: i32) -> (i32, i32) {
    %c0_i32 = arith.constant 0 : i32
    %c0_i32_0 = arith.constant 0 : i32
    return %c0_i32, %arg1 : i32, i32
  }
  func.func @transform_2(%arg0: i32, %arg1: i32) -> (i32, i32) {
    %c0_i32 = arith.constant 0 : i32
    %c0_i32_0 = arith.constant 0 : i32
    return %c0_i32, %arg1 : i32, i32
  }
  func.func @transform_3(%arg0: i32, %arg1: i32) -> (i32, i32) {
    %c0_i32 = arith.constant 0 : i32
    %c0_i32_0 = arith.constant 0 : i32
    return %arg1, %c0_i32 : i32, i32
  }
  func.func @transform_4(%arg0: i32, %arg1: i32) -> (i32, i32) {
    %c0_i32 = arith.constant 0 : i32
    %c0_i32_0 = arith.constant 0 : i32
    %c0_i32_1 = arith.constant 0 : i32
    return %c0_i32, %c0_i32_0 : i32, i32
  }
  func.func @transform_5(%arg0: i32, %arg1: i32) -> (i32, i32) {
    %c0_i32 = arith.constant 0 : i32
    %c0_i32_0 = arith.constant 0 : i32
    return %arg0, %c0_i32 : i32, i32
  }
}

</mosaic_0001>

<llo_original>
// kernel: tpu_custom_call.1
$region0: #{tpu_custom_call.1}
  #allocation0 [shape = 'u32[]', space=smem, size = 0x4, offset = 0x4, fixed_abs, tag = 'smem constant byte address 0x4 - core index']
  #allocation1 [shape = 'u32[144,128]{1,0:T(1,128)}', space=vmem, size = 0x12000, scoped, tag = 'internal scratch']
  %s0 = inlined_call_operand.hbm [shape: f32[16,32], index: 0, kind: input, shape index: {}]
  %s1 = inlined_call_operand.hbm [shape: bf16[32,128], index: 1, kind: input, shape index: {}]
  %s2 = inlined_call_operand.hbm [shape: f32[1,128], index: 2, kind: input, shape index: {}]
  %s3 = inlined_call_operand.hbm [shape: bf16[128,32], index: 3, kind: input, shape index: {}]
  %s4 = inlined_call_operand.hbm [shape: f32[1,32], index: 4, kind: input, shape index: {}]
  %s5 = inlined_call_operand.hbm [shape: f32[16,32], index: 5, kind: output, shape index: {}]
  %s6 = sld [smem:[#allocation0]]
  $region58: #{tpu_custom_call.1} parent=0
    _
  %s8 = ssub.s32 1, %s6
  %s9 = scalar_select 0, %s8, %s6
  $region1: #{tpu_custom_call.1} parent=0
    #allocation2 [shape = 'u8[8192]{0}', space=vmem, size = 0x2000, scoped, tag = 'input window, operand 0, single buffered']
    #allocation3 [shape = 's32[1]{0}', space=sflag, size = 0x4, scoped, tag = 'scoped memory for tpu_custom_call.1']
    #allocation4 [shape = 's32[1]{0}', space=sflag, size = 0x4, scoped, tag = 'scoped memory for tpu_custom_call.1']
    #allocation5 [shape = 'u8[8192]{0}', space=vmem, size = 0x2000, scoped, tag = 'input window, operand 1, single buffered']
    #allocation6 [shape = 's32[1]{0}', space=sflag, size = 0x4, scoped, tag = 'scoped memory for tpu_custom_call.1']
    #allocation7 [shape = 'u8[512]{0}', space=vmem, size = 0x400, scoped, tag = 'input window, operand 2, single buffered']
    #allocation8 [shape = 'u8[32768]{0}', space=vmem, size = 0x8000, scoped, tag = 'input window, operand 3, single buffered']
    #allocation9 [shape = 's32[1]{0}', space=sflag, size = 0x4, scoped, tag = 'scoped memory for tpu_custom_call.1']
    #allocation10 [shape = 'u8[512]{0}', space=vmem, size = 0x400, scoped, tag = 'input window, operand 4, single buffered']
    #allocation11 [shape = 'u8[8192]{0}', space=vmem, size = 0x2000, scoped, tag = 'output window, operand 0, single buffered']
    %10 = vsyncpa [#allocation3], 0
    %11 = vsyncpa [#allocation6], 0
    %12 = vsyncpa [#allocation9], 0
    %13 = vsyncpa [#allocation4], 0
    // Predicated region
    $region2: #{tpu_custom_call.1} parent=1 // pred_check
      _
    $region3: #{tpu_custom_call.1} parent=1 // pred_check_branch
      %15 = sbr.rel (0) target = $region5
    $region4: #{tpu_custom_call.1} parent=1 // pred_region
      %s17 = ssub.s32 256, 256
      %18 = vsyncadd [#allocation3], %s17
      %s19 = sshll.u32 [#allocation2], 4
      %s20 = int_to_ptr.vmem [resolvable:$true] %s19
      %25 = dma.hbm_to_vmem [thread:$0]  %s0, 256, %s20, [#allocation3], 128, 128, 8
    $region5: #{tpu_custom_call.1} parent=1 // pred_fallthru
      _
    // Predicated region
    $region6: #{tpu_custom_call.1} parent=1 // pred_check
      _
    $region7: #{tpu_custom_call.1} parent=1 // pred_check_branch
      %27 = sbr.rel (0) target = $region9
    $region8: #{tpu_custom_call.1} parent=1 // pred_region
      %s29 = ssub.s32 256, 256
      %30 = vsyncadd [#allocation6], %s29
      %s31 = sshll.u32 [#allocation5], 4
      %s32 = int_to_ptr.vmem [resolvable:$true] %s31
      %37 = dma.hbm_to_vmem [thread:$0]  %s1, 256, %s32, [#allocation6], 64, 64, 4
    $region9: #{tpu_custom_call.1} parent=1 // pred_fallthru
      _
    // Predicated region
    $region10: #{tpu_custom_call.1} parent=1 // pred_check
      _
    $region11: #{tpu_custom_call.1} parent=1 // pred_check_branch
      %39 = sbr.rel (0) target = $region13
    $region12: #{tpu_custom_call.1} parent=1 // pred_region
      %s41 = ssub.s32 16, 16
      %42 = vsyncadd [#allocation6], %s41
      %s44 = sshll.u32 [#allocation7], 4
      %s45 = int_to_ptr.vmem [resolvable:$true] %s44
      %47 = dma.hbm_to_vmem [thread:$0]  %s2, 16, %s45, [#allocation6]
    $region13: #{tpu_custom_call.1} parent=1 // pred_fallthru
      _
    // Predicated region
    $region14: #{tpu_custom_call.1} parent=1 // pred_check
      _
    $region15: #{tpu_custom_call.1} parent=1 // pred_check_branch
      %49 = sbr.rel (0) target = $region17
    $region16: #{tpu_custom_call.1} parent=1 // pred_region
      %s51 = ssub.s32 1024, 1024
      %52 = vsyncadd [#allocation9], %s51
      %s53 = sshll.u32 [#allocation8], 4
      %s54 = int_to_ptr.vmem [resolvable:$true] %s53
      %59 = dma.hbm_to_vmem [thread:$0]  %s3, 1024, %s54, [#allocation9], 64, 64, 4
    $region17: #{tpu_custom_call.1} parent=1 // pred_fallthru
      _
    // Predicated region
    $region18: #{tpu_custom_call.1} parent=1 // pred_check
      _
    $region19: #{tpu_custom_call.1} parent=1 // pred_check_branch
      %61 = sbr.rel (0) target = $region21
    $region20: #{tpu_custom_call.1} parent=1 // pred_region
      %s63 = ssub.s32 16, 16
      %64 = vsyncadd [#allocation9], %s63
      %s66 = sshll.u32 [#allocation10], 4
      %s67 = int_to_ptr.vmem [resolvable:$true] %s66
      %69 = dma.hbm_to_vmem [thread:$0]  %s4, 16, %s67, [#allocation9]
    $region21: #{tpu_custom_call.1} parent=1 // pred_fallthru
      _
    // Predicated region
    $region22: #{tpu_custom_call.1} parent=1 // pred_check
      _
    $region23: #{tpu_custom_call.1} parent=1 // pred_check_branch
      %71 = sbr.rel (0) target = $region25
    $region24: #{tpu_custom_call.1} parent=1 // pred_region
      %72 = dma.done [#allocation3], 256
    $region25: #{tpu_custom_call.1} parent=1 // pred_fallthru
      _
    // Predicated region
    $region26: #{tpu_custom_call.1} parent=1 // pred_check
      _
    $region27: #{tpu_custom_call.1} parent=1 // pred_check_branch
      %74 = sbr.rel (0) target = $region29
    $region28: #{tpu_custom_call.1} parent=1 // pred_region
      %75 = dma.done [#allocation6], 256
    $region29: #{tpu_custom_call.1} parent=1 // pred_fallthru
      _
    // Predicated region
    $region30: #{tpu_custom_call.1} parent=1 // pred_check
      _
    $region31: #{tpu_custom_call.1} parent=1 // pred_check_branch
      %77 = sbr.rel (0) target = $region33
    $region32: #{tpu_custom_call.1} parent=1 // pred_region
      %78 = dma.done [#allocation6], 16
    $region33: #{tpu_custom_call.1} parent=1 // pred_fallthru
      _
    // Predicated region
    $region34: #{tpu_custom_call.1} parent=1 // pred_check
      _
    $region35: #{tpu_custom_call.1} parent=1 // pred_check_branch
      %80 = sbr.rel (0) target = $region37
    $region36: #{tpu_custom_call.1} parent=1 // pred_region
      %81 = dma.done [#allocation9], 1024
    $region37: #{tpu_custom_call.1} parent=1 // pred_fallthru
      _
    // Predicated region
    $region38: #{tpu_custom_call.1} parent=1 // pred_check
      _
    $region39: #{tpu_custom_call.1} parent=1 // pred_check_branch
      %83 = sbr.rel (0) target = $region41
    $region40: #{tpu_custom_call.1} parent=1 // pred_region
      %84 = dma.done [#allocation9], 16
    $region41: #{tpu_custom_call.1} parent=1 // pred_fallthru
      _
    %p86 = scmp.eq.s32.totalorder 0, 0
    // Predicated region
    $region42: #{tpu_custom_call.1} parent=1 // pred_check
      %p87 = pneg %p86
    $region43: #{tpu_custom_call.1} parent=1 // pred_check_branch
      %89 = sbr.rel (%p87) target = $region45
    $region44: #{tpu_custom_call.1} parent=1 // pred_region
      %vm90 = vcmask 261120
      %91 = vst.msk [vmem:[#allocation11] sm:$0xff] %vm90, 0.0
      %92 = vst.msk [vmem:[#allocation11 + $0x8] sm:$0xff] %vm90, 0.0
    $region45: #{tpu_custom_call.1} parent=1 // pred_fallthru
      _
    %v93 = vld [vmem:[#allocation2] sm:$0xff]
    %v94 = vld [vmem:[#allocation2 + $0x8] sm:$0xff]
    %v95 = vpack.c.bf16 %v94, %v93
    %v96 = vld [vmem:[#allocation5] sm:$0xf]
    %v97 = vld [vmem:[#allocation5 + $0x4] sm:$0xf]
    %v98 = vld [vmem:[#allocation5 + $0x8] sm:$0xf]
    %v99 = vld [vmem:[#allocation5 + $0xc] sm:$0xf]
    %v100 = vld [vmem:[#allocation7] sm:$0x1]
    %v102 = vlaneseq
    %v103 = vshrl.u32 %v102, 7
    %v104 = vsub.s32 0, %v103
    %v105 = vrot.slane %v100, %v104
    %v111 = vunpack.c.l.b16 %v96
    %v112 = vunpack.c.l.b16 %v97
    %v113 = vunpack.c.l.b16 %v98
    %v114 = vunpack.c.l.b16 %v99
    %v115 = vpack.c.b16 %v112, %v111
    %v116 = vpack.c.b16 %v114, %v113
    %vm119 = vcmask 261120
    %v121 = vsel %vm119, %v95, 0
    %123 = vmatprep.subr.bf16.mxu0 0
    %124 = vmatpush1.bf16.msra.mxu0 %v115
    %125 = vmatprep.subr.bf16.mxu0 0
    %126 = vmatpush1.bf16.msra.mxu0 %v116
    %127 = vmatprep.subr.bf16.mxu0 0
    %128 = vmatpush1.bf16.msra.mxu0 0
    %129 = vmatprep.subr.bf16.mxu0 0
    %130 = vmatpush1.bf16.msra.mxu0 0
    %131 = vmatprep.subr.bf16.mxu0 0
    %132 = vmatpush1.bf16.msra.mxu0 0
    %133 = vmatprep.subr.bf16.mxu0 0
    %134 = vmatpush1.bf16.msra.mxu0 0
    %135 = vmatprep.subr.bf16.mxu0 0
    %136 = vmatpush1.bf16.msra.mxu0 0
    %137 = vmatprep.subr.bf16.mxu0 0
    %138 = vmatpush1.bf16.msra.mxu0 0
    %139 = vmatprep.subr.bf16.mxu0 0
    %140 = vmatpush1.bf16.msra.mxu0 0
    %141 = vmatprep.subr.bf16.mxu0 0
    %142 = vmatpush1.bf16.msra.mxu0 0
    %143 = vmatprep.subr.bf16.mxu0 0
    %144 = vmatpush1.bf16.msra.mxu0 0
    %145 = vmatprep.subr.bf16.mxu0 0
    %146 = vmatpush1.bf16.msra.mxu0 0
    %147 = vmatprep.subr.bf16.mxu0 0
    %148 = vmatpush1.bf16.msra.mxu0 0
    %149 = vmatprep.subr.bf16.mxu0 0
    %150 = vmatpush1.bf16.msra.mxu0 0
    %151 = vmatprep.subr.bf16.mxu0 0
    %152 = vmatpush1.bf16.msra.mxu0 0
    %153 = vmatprep.subr.bf16.mxu0 0
    %154 = vmatpush1.bf16.msra.mxu0 0
    %155 = vmatprep.mubr.bf16.mxu0 0
    %156 = vmatmul.mubr.bf16.gmra.mrb[0].mxu0 %v121
    %v157 = vpop.f32.mrb[0].mxu0
    %v158 = vadd.f32 %v105, %v157
    %v159 = vpop.f32.mrb[0].mxu0
    %v160 = vpop.f32.mrb[0].mxu0
    %v161 = vadd.f32 %v105, %v160
    %v162 = vpop.f32.mrb[0].mxu0
    %163 = vdwg.mxu0
    %v164 = vmul.f32 %v158, 0.5
    %v165 = vmul.f32 %v161, 0.5
    %v166 = vmul.f32 %v158, 0.044715
    %v167 = vmul.f32 %v161, 0.044715
    %v168 = vmul.f32 %v166, %v158
    %v169 = vmul.f32 %v167, %v161
    %v170 = vmul.f32 %v168, %v158
    %v171 = vmul.f32 %v169, %v161
    %v172 = vadd.f32 %v158, %v170
    %v173 = vadd.f32 %v161, %v171
    %v174 = vmul.f32 %v172, 0.7978846
    %v175 = vmul.f32 %v173, 0.7978846
    %v176 = vtanh.pop %v174
    %v177 = vtanh.pop %v175
    %v178 = vadd.f32 %v176, 1.0
    %v179 = vadd.f32 %v177, 1.0
    %v180 = vmul.f32 %v164, %v178
    %v181 = vmul.f32 %v165, %v179
    %v182 = vld [vmem:[#allocation11] sm:$0xff]
    %v183 = vld [vmem:[#allocation11 + $0x8] sm:$0xff]
    %v184 = vpack.c.bf16 %v181, %v180
    %v185 = vld [vmem:[#allocation8] sm:$0xf]
    %v186 = vld [vmem:[#allocation8 + $0x4] sm:$0xf]
    %v187 = vld [vmem:[#allocation8 + $0x8] sm:$0xf]
    %v188 = vld [vmem:[#allocation8 + $0xc] sm:$0xf]
    %v189 = vld [vmem:[#allocation8 + $0x10] sm:$0xf]
    %v190 = vld [vmem:[#allocation8 + $0x14] sm:$0xf]
    %v191 = vld [vmem:[#allocation8 + $0x18] sm:$0xf]
    %v192 = vld [vmem:[#allocation8 + $0x1c] sm:$0xf]
    %v193 = vld [vmem:[#allocation8 + $0x20] sm:$0xf]
    %v194 = vld [vmem:[#allocation8 + $0x24] sm:$0xf]
    %v195 = vld [vmem:[#allocation8 + $0x28] sm:$0xf]
    %v196 = vld [vmem:[#allocation8 + $0x2c] sm:$0xf]
    %v197 = vld [vmem:[#allocation8 + $0x30] sm:$0xf]
    %v198 = vld [vmem:[#allocation8 + $0x34] sm:$0xf]
    %v199 = vld [vmem:[#allocation8 + $0x38] sm:$0xf]
    %v200 = vld [vmem:[#allocation8 + $0x3c] sm:$0xf]
    %v217 = vunpack.c.l.b16 %v185
    %v218 = vunpack.c.l.b16 %v186
    %v219 = vunpack.c.l.b16 %v187
    %v220 = vunpack.c.l.b16 %v188
    %v221 = vunpack.c.l.b16 %v189
    %v222 = vunpack.c.l.b16 %v190
    %v223 = vunpack.c.l.b16 %v191
    %v224 = vunpack.c.l.b16 %v192
    %v225 = vunpack.c.l.b16 %v193
    %v226 = vunpack.c.l.b16 %v194
    %v227 = vunpack.c.l.b16 %v195
    %v228 = vunpack.c.l.b16 %v196
    %v229 = vunpack.c.l.b16 %v197
    %v230 = vunpack.c.l.b16 %v198
    %v231 = vunpack.c.l.b16 %v199
    %v232 = vunpack.c.l.b16 %v200
    %v233 = vpack.c.b16 %v218, %v217
    %v234 = vpack.c.b16 %v220, %v219
    %v235 = vpack.c.b16 %v222, %v221
    %v236 = vpack.c.b16 %v224, %v223
    %v237 = vpack.c.b16 %v226, %v225
    %v238 = vpack.c.b16 %v228, %v227
    %v239 = vpack.c.b16 %v230, %v229
    %v240 = vpack.c.b16 %v232, %v231
    %249 = vmatprep.subr.bf16.mxu0 0
    %250 = vmatpush1.bf16.msra.mxu0 %v233
    %251 = vmatprep.subr.bf16.mxu0 0
    %252 = vmatpush1.bf16.msra.mxu0 %v234
    %253 = vmatprep.subr.bf16.mxu0 0
    %254 = vmatpush1.bf16.msra.mxu0 %v235
    %255 = vmatprep.subr.bf16.mxu0 0
    %256 = vmatpush1.bf16.msra.mxu0 %v236
    %257 = vmatprep.subr.bf16.mxu0 0
    %258 = vmatpush1.bf16.msra.mxu0 %v237
    %259 = vmatprep.subr.bf16.mxu0 0
    %260 = vmatpush1.bf16.msra.mxu0 %v238
    %261 = vmatprep.subr.bf16.mxu0 0
    %262 = vmatpush1.bf16.msra.mxu0 %v239
    %263 = vmatprep.subr.bf16.mxu0 0
    %264 = vmatpush1.bf16.msra.mxu0 %v240
    %265 = vmatprep.subr.bf16.mxu0 0
    %266 = vmatpush1.bf16.msra.mxu0 0
    %267 = vmatprep.subr.bf16.mxu0 0
    %268 = vmatpush1.bf16.msra.mxu0 0
    %269 = vmatprep.subr.bf16.mxu0 0
    %270 = vmatpush1.bf16.msra.mxu0 0
    %271 = vmatprep.subr.bf16.mxu0 0
    %272 = vmatpush1.bf16.msra.mxu0 0
    %273 = vmatprep.subr.bf16.mxu0 0
    %274 = vmatpush1.bf16.msra.mxu0 0
    %275 = vmatprep.subr.bf16.mxu0 0
    %276 = vmatpush1.bf16.msra.mxu0 0
    %277 = vmatprep.subr.bf16.mxu0 0
    %278 = vmatpush1.bf16.msra.mxu0 0
    %279 = vmatprep.subr.bf16.mxu0 0
    %280 = vmatpush1.bf16.msra.mxu0 0
    %281 = vmatprep.mubr.bf16.mxu0 0
    %282 = vmatmul.mubr.bf16.gmra.mrb[0].mxu0 %v184
    %v283 = vpop.f32.mrb[0].mxu0
    %v284 = vadd.f32 0.0, %v283
    %v285 = vpop.f32.mrb[0].mxu0
    %v286 = vpop.f32.mrb[0].mxu0
    %v287 = vadd.f32 0.0, %v286
    %v288 = vpop.f32.mrb[0].mxu0
    %289 = vdwg.mxu0
    %v290 = vadd.f32 %v182, %v284
    %v291 = vadd.f32 %v183, %v287
    %292 = vst.msk [vmem:[#allocation11] sm:$0xff] %vm119, %v290
    %293 = vst.msk [vmem:[#allocation11 + $0x8] sm:$0xff] %vm119, %v291
    // Predicated region
    $region46: #{tpu_custom_call.1} parent=1 // pred_check
      %p294 = pneg %p86
    $region47: #{tpu_custom_call.1} parent=1 // pred_check_branch
      %296 = sbr.rel (%p294) target = $region49
    $region48: #{tpu_custom_call.1} parent=1 // pred_region
      %v297 = vld [vmem:[#allocation11] sm:$0xff]
      %v298 = vld [vmem:[#allocation11 + $0x8] sm:$0xff]
      %v299 = vld [vmem:[#allocation10] sm:$0x1]
      %v301 = vlaneseq
      %v302 = vshrl.u32 %v301, 7
      %v303 = vsub.s32 0, %v302
      %v304 = vrot.slane %v299, %v303
      %v306 = vadd.f32 %v297, %v304
      %v307 = vadd.f32 %v298, %v304
      %308 = vst.msk [vmem:[#allocation11] sm:$0xff] %vm119, %v306
      %309 = vst.msk [vmem:[#allocation11 + $0x8] sm:$0xff] %vm119, %v307
    $region49: #{tpu_custom_call.1} parent=1 // pred_fallthru
      _
    // Predicated region
    $region50: #{tpu_custom_call.1} parent=1 // pred_check
      _
    $region51: #{tpu_custom_call.1} parent=1 // pred_check_branch
      %311 = sbr.rel (0) target = $region53
    $region52: #{tpu_custom_call.1} parent=1 // pred_region
      %s313 = ssub.s32 256, 256
      %314 = vsyncadd [#allocation4], %s313
      %s315 = sshll.u32 [#allocation11], 4
      %s316 = int_to_ptr.vmem [resolvable:$true] %s315
      %321 = dma.vmem_to_hbm [thread:$0]  %s316, 256, %s5, [#allocation4], 128, 128, 8
    $region53: #{tpu_custom_call.1} parent=1 // pred_fallthru
      _
    // Predicated region
    $region54: #{tpu_custom_call.1} parent=1 // pred_check
      _
    $region55: #{tpu_custom_call.1} parent=1 // pred_check_branch
      %323 = sbr.rel (0) target = $region57
    $region56: #{tpu_custom_call.1} parent=1 // pred_region
      %324 = dma.done [#allocation4], 256
    $region57: #{tpu_custom_call.1} parent=1 // pred_fallthru
      _
    %325 = vsyncpa [#allocation3], 1
    %326 = vsyncpa [#allocation6], 1
    %327 = vsyncpa [#allocation9], 1
    %328 = vsyncpa [#allocation4], 1

</llo_original>
